<compile_context>
chip_gen: v7x
topology: tpu7x:2x2x1
jax: 0.10.0
libtpu: 0.0.40
codegen_flags: <defaults>
</compile_context>

<pallas_src>
from functools import lru_cache

import jax
import jax.numpy as jnp
from jax.experimental import pallas as pl
from jax.experimental.pallas import tpu as pltpu

_MiB = 1024 * 1024
_SMALL_TENSOR_BYTES = 1 * _MiB   # below this, a single grid step is cheapest
_TARGET_STEPS = 4                # min grid steps for DMA overlap / v7x megacore
_SLAB_BYTES = 512 * 1024         # target live f32 working set per in-kernel slab


@lru_cache(maxsize=None)
def _vmem_config():
    """(budget for the double-buffered in+out blocks, explicit scoped-VMEM limit)."""
    kind = ""
    try:
        kind = jax.devices()[0].device_kind.lower()
    except Exception:
        pass
    if "v7" in kind:
        # 64 MiB physical VMEM / TC, ~3.2 TB/s HBM: big blocks amortize the
        # ~0.35 us per-step overhead; leave headroom under the physical limit.
        return 24 * _MiB, 40 * _MiB
    if "v6" in kind:
        # 128 MiB physical, ~1.4 TB/s: same big-block policy, more headroom.
        return 24 * _MiB, 48 * _MiB
    if "v5e" in kind or "v5 lite" in kind or "v5lite" in kind:
        # v5e default scoped limit is only 16 MiB: keep blocks modest but raise
        # the limit explicitly so block buffers + slab temporaries always fit.
        return 12 * _MiB, 28 * _MiB
    # Unknown / older generations: conservative blocks, default scoped limit.
    return 12 * _MiB, None


def _cdiv(a, b):
    return -(-a // b)


def _round_up(x, m):
    return _cdiv(x, m) * m


def _choose_tiles(n, extent, unit_bytes, gran, budget):
    """Pick (b_tile, tile) for blocks of shape (b_tile, C, tile[, 128]).

    `extent`: number of spatial units along the tiled axis (lanes, or 128-lane
    rows for the small-C layout); `unit_bytes`: HBM bytes of one unit across
    the full (sublane-padded) channel dim; `gran`: hardware granularity of the
    tiled axis (128 lanes / 8 sublane rows).  Keeps the in+out double-buffered
    footprint under `budget`, prefers wide tiles (long contiguous DMAs, fewer
    grid steps) and keeps >= _TARGET_STEPS grid steps for pipelining and
    v7x megacore sharding.
    """

    def footprint(b, t):  # in + out blocks, double-buffered (VMEM-tile padded)
        return 4 * b * _round_up(t, gran) * unit_bytes

    ext_pad = _round_up(extent, gran)
    total = n * ext_pad * unit_bytes

    # Tiny tensors: one full-extent block (a single grid step) is cheapest.
    if total <= _SMALL_TENSOR_BYTES and footprint(n, extent) <= budget:
        return n, extent

    # Widest spatial tile that fits the budget at b_tile = 1.
    tile = min(ext_pad, max(gran, (budget // (4 * unit_bytes)) // gran * gran))
    # Keep at least _TARGET_STEPS grid steps so both v7x TensorCores get work
    # and adjacent steps overlap their input/output DMAs.
    while n * _cdiv(extent, tile) < _TARGET_STEPS and tile > gran:
        tile = max(gran, _round_up(tile // 2, gran))
    if tile >= extent:
        # Single spatial block: use the exact (full) dim so the block shape is
        # always either gran-divisible or equal to the full array dim.
        tile = extent

    # Group batch elements while the budget allows and enough steps remain.
    steps_sp = _cdiv(extent, tile)
    b_tile = 1
    for b in (16, 8, 4, 2):
        if n % b == 0 and footprint(b, tile) <= budget and (n // b) * steps_sp >= _TARGET_STEPS:
            b_tile = b
            break
    return b_tile, tile


def _pixelnorm_kernel(x_ref, o_ref):
    """Normalize across axis=1 (channels) of one VMEM block.

    Block layout is either (B_TILE, C, TILE_S) with the flattened spatial axis
    on lanes, or (B_TILE, C, ROWS_TILE, 128) for small C (spatial rows fill the
    sublanes).  The block is processed in spatial slabs along axis 2 so the
    live f32 temporaries stay ~_SLAB_BYTES regardless of block size, and the
    multiply happens in f32 with a single downcast at the store.
    """
    shape = x_ref.shape
    ndim = len(shape)
    b, c, sp = shape[0], shape[1], shape[2]
    gran = 128 if ndim == 3 else 8                       # slab granularity on axis 2
    f32_unit = b * c * 4 * (1 if ndim == 3 else 128)     # f32 bytes per axis-2 unit
    chunk = max(gran, (_SLAB_BYTES // (f32_unit * gran)) * gran)
    chunk = min(chunk, sp)
    n_full, rem = divmod(sp, chunk)

    def slab(start, size):
        if ndim == 3:
            xs = x_ref[:, :, pl.ds(start, size)].astype(jnp.float32)
        else:
            xs = x_ref[:, :, pl.ds(start, size), :].astype(jnp.float32)
        # Reduction is along C only: in a partial (out-of-bounds) block the
        # garbage spatial positions never feed valid ones, and their stores are
        # masked by the partial output DMA.
        inv = jax.lax.rsqrt(jnp.mean(xs * xs, axis=1, keepdims=True) + 1e-8)
        y = (xs * inv).astype(o_ref.dtype)
        if ndim == 3:
            o_ref[:, :, pl.ds(start, size)] = y
        else:
            o_ref[:, :, pl.ds(start, size), :] = y

    if n_full == 1 and rem == 0:
        slab(0, chunk)                                   # whole block in one slab
    else:
        if n_full > 0:
            def body(i, carry):
                slab(pl.multiple_of(i * chunk, chunk), chunk)
                return carry
            jax.lax.fori_loop(0, n_full, body, 0, unroll=(n_full <= 8))
        if rem:
            slab(n_full * chunk, rem)


@jax.jit
def pixel_norm(x: jax.Array) -> jax.Array:
    """PixelNorm over the channel dim of an NCHW tensor (Pallas TPU kernel)."""
    n, c, h, w = x.shape
    s = h * w
    itemsize = x.dtype.itemsize
    budget, vmem_limit = _vmem_config()

    # Sublane packing of this dtype: 8 rows/tile for f32, 16 for bf16, 32 for int8.
    sub_pack = max(8, 8 * (4 // itemsize))

    if c < sub_pack and s % 128 == 0:
        # Small C: put spatial rows on the sublanes instead of a mostly-empty
        # channel axis -> full vreg occupancy, no sublane-padding VMEM blowup.
        rows = s // 128
        gran = 8
        unit_bytes = c * 128 * itemsize
        b_tile, tile = _choose_tiles(n, rows, unit_bytes, gran, budget)
        x_r = x.reshape(n, c, rows, 128)
        block = (b_tile, c, tile, 128)
        index_map = lambda i, j: (i, 0, j, 0)
        grid = (n // b_tile, _cdiv(rows, tile))
        out_struct = jax.ShapeDtypeStruct((n, c, rows, 128), x.dtype)
    else:
        # Channels on the sublane-adjacent axis, flattened spatial on lanes.
        # Account for C being padded to the sublane pack inside VMEM tiles.
        gran = 128
        unit_bytes = _round_up(c, sub_pack) * itemsize
        b_tile, tile = _choose_tiles(n, s, unit_bytes, gran, budget)
        x_r = x.reshape(n, c, s)
        block = (b_tile, c, tile)
        index_map = lambda i, j: (i, 0, j)
        grid = (n // b_tile, _cdiv(s, tile))
        out_struct = jax.ShapeDtypeStruct((n, c, s), x.dtype)

    # The explicit scoped-VMEM limit must always cover the chosen blocks plus
    # the in-kernel slab temporaries (also guards the huge-C corner case).
    if vmem_limit is not None:
        needed = 4 * b_tile * _round_up(tile, gran) * unit_bytes + 2 * _MiB
        vmem_limit = max(vmem_limit, needed)

    out_r = pl.pallas_call(
        _pixelnorm_kernel,
        out_shape=out_struct,
        grid_spec=pltpu.PrefetchScalarGridSpec(
            num_scalar_prefetch=0,
            grid=grid,
            in_specs=[pl.BlockSpec(block, index_map)],
            out_specs=pl.BlockSpec(block, index_map),
        ),
        compiler_params=pltpu.CompilerParams(
            # Both grid axes are independent -> v7x can shard them across its
            # two TensorCores; v5e/v6e just run them as a pipelined loop.
            dimension_semantics=("parallel", "parallel"),
            vmem_limit_bytes=vmem_limit,
        ),
        cost_estimate=pl.CostEstimate(
            flops=3 * n * c * s,
            transcendentals=n * s,
            bytes_accessed=2 * n * c * s * itemsize,
        ),
    )(x_r)
    return out_r.reshape(n, c, h, w)


def _ref_pixel_norm(x):
    xf = x.astype(jnp.float32)
    y = xf * jax.lax.rsqrt(jnp.mean(xf * xf, axis=1, keepdims=True) + 1e-8)
    return y.astype(x.dtype)


if __name__ == "__main__":
    k1, k2, k3, k4 = jax.random.split(jax.random.PRNGKey(0), 4)

    # 1) Small-C NCHW input (canonical test shape): C=4 < sublane pack and
    #    S=256 is 128-divisible -> (N, C, S/128, 128) repacked single-block path.
    x1 = jax.random.normal(k1, (2, 4, 16, 16), dtype=jnp.float32)
    y1 = pixel_norm(x1)
    jax.block_until_ready(y1)
    assert y1.shape == x1.shape and y1.dtype == x1.dtype
    assert jnp.allclose(y1, _ref_pixel_norm(x1), atol=1e-5, rtol=1e-5)

    # 2) Larger feature map with odd batch and S=10000 (not a multiple of 128):
    #    exercises the pad-free partial-block tiling and the multi-slab loop.
    x2 = jax.random.normal(k2, (3, 32, 100, 100), dtype=jnp.float32)
    y2 = pixel_norm(x2)
    jax.block_until_ready(y2)
    assert y2.shape == x2.shape and y2.dtype == x2.dtype
    assert jnp.allclose(y2, _ref_pixel_norm(x2), atol=1e-4, rtol=1e-4)

    # 3) Non-multiple-of-8 channel count with non-128-multiple S: 3-D path with
    #    a full-extent lane block (sublane padding accounted in the budget).
    x3 = jax.random.normal(k3, (2, 20, 30, 30), dtype=jnp.float32)
    y3 = pixel_norm(x3)
    jax.block_until_ready(y3)
    assert y3.shape == x3.shape and y3.dtype == x3.dtype
    assert jnp.allclose(y3, _ref_pixel_norm(x3), atol=1e-4, rtol=1e-4)

    # 4) bf16 input: reduction, rsqrt and the normalize multiply all in f32,
    #    with a single downcast at the store.
    x4 = jax.random.normal(k4, (2, 4, 16, 16), dtype=jnp.float32).astype(jnp.bfloat16)
    y4 = pixel_norm(x4)
    jax.block_until_ready(y4)
    assert y4.shape == x4.shape and y4.dtype == x4.dtype
    assert jnp.allclose(y4.astype(jnp.float32),
                        _ref_pixel_norm(x4).astype(jnp.float32),
                        atol=5e-2, rtol=5e-2)

    print("KERNEL_OK")
</pallas_src>

<mosaic_0001>
module attributes {stable_mosaic.version = 11 : i64} {
  func.func @_pixelnorm_kernel(%arg0: i32, %arg1: i32, %arg2: memref<2x4x2x128xf32, #tpu.memory_space<vmem>>, %arg3: memref<2x4x2x128xf32, #tpu.memory_space<vmem>>) attributes {dimension_semantics = [#tpu.dimension_semantics<parallel>, #tpu.dimension_semantics<parallel>], iteration_bounds = array<i64: 1, 1>, scalar_prefetch = 0 : i64, scratch_operands = 0 : i64, tpu.core_type = #tpu.core_type<tc>, window_params = [{transform_indices = @transform_0, window_bounds = array<i64: 2, 4, 2, 128>}, {transform_indices = @transform_1, window_bounds = array<i64: 2, 4, 2, 128>}]} {
    %c0 = arith.constant 0 : index
    %c0_0 = arith.constant 0 : index
    %c0_1 = arith.constant 0 : index
    %c0_2 = arith.constant 0 : index
    %0 = vector.load %arg2[%c0, %c0_0, %c0_1, %c0_2] : memref<2x4x2x128xf32, #tpu.memory_space<vmem>>, vector<2x4x2x128xf32>
    %1 = arith.mulf %0, %0 : vector<2x4x2x128xf32>
    %cst = arith.constant dense<0.000000e+00> : vector<2x2x128xf32>
    %2 = vector.multi_reduction <add>, %1, %cst [1] : vector<2x4x2x128xf32> to vector<2x2x128xf32>
    %3 = vector.shape_cast %2 : vector<2x2x128xf32> to vector<2x1x2x128xf32>
    %cst_3 = arith.constant 4.000000e+00 : f32
    %4 = vector.broadcast %cst_3 : f32 to vector<2x1x2x128xf32>
    %5 = arith.divf %3, %4 : vector<2x1x2x128xf32>
    %cst_4 = arith.constant 9.99999993E-9 : f32
    %6 = vector.broadcast %cst_4 : f32 to vector<2x1x2x128xf32>
    %7 = arith.addf %5, %6 : vector<2x1x2x128xf32>
    %8 = math.rsqrt %7 : vector<2x1x2x128xf32>
    %9 = vector.broadcast %8 : vector<2x1x2x128xf32> to vector<2x4x2x128xf32>
    %10 = arith.mulf %0, %9 : vector<2x4x2x128xf32>
    %c0_5 = arith.constant 0 : index
    %c0_6 = arith.constant 0 : index
    %c0_7 = arith.constant 0 : index
    %c0_8 = arith.constant 0 : index
    %11 = vector.load %arg3[%c0_5, %c0_6, %c0_7, %c0_8] : memref<2x4x2x128xf32, #tpu.memory_space<vmem>>, vector<2x4x2x128xf32>
    tpu.vector_store %arg3[%c0_5, %c0_6, %c0_7, %c0_8], %10 {strides = array<i32>} : memref<2x4x2x128xf32, #tpu.memory_space<vmem>>, vector<2x4x2x128xf32>,
    return
  }
  func.func @transform_0(%arg0: i32, %arg1: i32) -> (i32, i32, i32, i32) {
    %c0_i32 = arith.constant 0 : i32
    %c0_i32_0 = arith.constant 0 : i32
    %c0_i32_1 = arith.constant 0 : i32
    return %arg0, %c0_i32, %arg1, %c0_i32_0 : i32, i32, i32, i32
  }
  func.func @transform_1(%arg0: i32, %arg1: i32) -> (i32, i32, i32, i32) {
    %c0_i32 = arith.constant 0 : i32
    %c0_i32_0 = arith.constant 0 : i32
    %c0_i32_1 = arith.constant 0 : i32
    return %arg0, %c0_i32, %arg1, %c0_i32_0 : i32, i32, i32, i32
  }
}

</mosaic_0001>

<llo_original>
// kernel: pixel_norm.1
$region0: #{pixel_norm.1}
  #allocation0 [shape = 'u32[]', space=smem, size = 0x4, offset = 0x4, fixed_abs, tag = 'smem constant byte address 0x4 - core index']
  #allocation1 [shape = 'u32[144,128]{1,0:T(1,128)}', space=vmem, size = 0x12000, scoped, tag = 'internal scratch']
  %s0 = inlined_call_operand.vmem [shape: f32[2,4,2,128], index: 0, kind: input, shape index: {}]
  %s1 = inlined_call_operand.vmem [shape: f32[2,4,2,128], index: 1, kind: output, shape index: {}]
  %s2 = sld [smem:[#allocation0]]
  $region14: #{pixel_norm.1} parent=0
    _
  %s4 = ssub.s32 1, %s2
  %s5 = scalar_select 0, %s4, %s2
  // Predicated region
  $region2: #{pixel_norm.1} parent=0 // pred_check
    _
  $region3: #{pixel_norm.1} parent=0 // pred_check_branch
    %7 = sbr.rel (0) target = $region5
  $region4: #{pixel_norm.1} parent=0 // pred_region
    _
  $region5: #{pixel_norm.1} parent=0 // pred_fallthru
    _
  %v8 = vld [vmem:[%s0] sm:$0x3]
  %v9 = vld [vmem:[%s0 + $0x2] sm:$0x3]
  %v10 = vld [vmem:[%s0 + $0x4] sm:$0x3]
  %v11 = vld [vmem:[%s0 + $0x6] sm:$0x3]
  %v12 = vld [vmem:[%s0 + $0x8] sm:$0x3]
  %v13 = vld [vmem:[%s0 + $0xa] sm:$0x3]
  %v14 = vld [vmem:[%s0 + $0xc] sm:$0x3]
  %v15 = vld [vmem:[%s0 + $0xe] sm:$0x3]
  %v16 = vmul.f32 %v8, %v8
  %v17 = vmul.f32 %v9, %v9
  %v18 = vmul.f32 %v10, %v10
  %v19 = vmul.f32 %v11, %v11
  %v20 = vmul.f32 %v12, %v12
  %v21 = vmul.f32 %v13, %v13
  %v22 = vmul.f32 %v14, %v14
  %v23 = vmul.f32 %v15, %v15
  %vm24 = vcmask 1041408
  %v25 = vsel %vm24, %v16, 0.0
  %v26 = vsel %vm24, %v17, 0.0
  %v27 = vadd.f32 %v25, %v26
  %v28 = vsel %vm24, %v18, 0.0
  %v29 = vadd.f32 %v27, %v28
  %v30 = vsel %vm24, %v19, 0.0
  %v31 = vadd.f32 %v29, %v30
  %v32 = vsel %vm24, %v20, 0.0
  %v33 = vsel %vm24, %v21, 0.0
  %v34 = vadd.f32 %v32, %v33
  %v35 = vsel %vm24, %v22, 0.0
  %v36 = vadd.f32 %v34, %v35
  %v37 = vsel %vm24, %v23, 0.0
  %v38 = vadd.f32 %v36, %v37
  %v39 = vrcp.pop 4.0
  %v40 = vmul.f32 %v31, %v39
  %v41 = vmul.f32 %v38, %v39
  %v42 = vadd.f32 %v40, 1e-08
  %v43 = vadd.f32 %v41, 1e-08
  %v44 = vrsqrt.pop %v42
  %v45 = vrsqrt.pop %v43
  %v46 = vmul.f32 %v8, %v44
  %v47 = vmul.f32 %v9, %v44
  %v48 = vmul.f32 %v10, %v44
  %v49 = vmul.f32 %v11, %v44
  %v50 = vmul.f32 %v12, %v45
  %v51 = vmul.f32 %v13, %v45
  %v52 = vmul.f32 %v14, %v45
  %v53 = vmul.f32 %v15, %v45
  %54 = vst [vmem:[%s1] sm:$0x3] %v46
  %55 = vst [vmem:[%s1 + $0x2] sm:$0x3] %v47
  %56 = vst [vmem:[%s1 + $0x4] sm:$0x3] %v48
  %57 = vst [vmem:[%s1 + $0x6] sm:$0x3] %v49
  %58 = vst [vmem:[%s1 + $0x8] sm:$0x3] %v50
  %59 = vst [vmem:[%s1 + $0xa] sm:$0x3] %v51
  %60 = vst [vmem:[%s1 + $0xc] sm:$0x3] %v52
  %61 = vst [vmem:[%s1 + $0xe] sm:$0x3] %v53
  // Predicated region
  $region6: #{pixel_norm.1} parent=0 // pred_check
    _
  $region7: #{pixel_norm.1} parent=0 // pred_check_branch
    %63 = sbr.rel (0) target = $region9
  $region8: #{pixel_norm.1} parent=0 // pred_region
    _
  $region9: #{pixel_norm.1} parent=0 // pred_fallthru
    _
  // Predicated region
  $region10: #{pixel_norm.1} parent=0 // pred_check
    _
  $region11: #{pixel_norm.1} parent=0 // pred_check_branch
    %65 = sbr.rel (0) target = $region13
  $region12: #{pixel_norm.1} parent=0 // pred_region
    _
  $region13: #{pixel_norm.1} parent=0 // pred_fallthru
    _

</llo_original>
